<compile_context>
chip_gen: v7x
topology: tpu7x:2x2x1
jax: 0.10.0
libtpu: 0.0.40
codegen_flags: <defaults>
</compile_context>

<pallas_src>
import jax
import jax.numpy as jnp
from jax import lax
from jax.experimental import pallas as pl
from jax.experimental.pallas import tpu as pltpu


def _feature_dropout_kernel(idx_ref, x_ref, noise_ref, o_ref):
    # idx_ref:   (tl, 1)  int32   -- batch index of each row in this tile
    # x_ref:     (tl, F)  input rows (in/out dtype)
    # noise_ref: (B,  F)  float32  -- per-(batch, feature) keep/scale mask
    # o_ref:     (tl, F)
    tl = x_ref.shape[0]
    B = noise_ref.shape[0]

    idx = idx_ref[...]                                   # (tl, 1)
    col = lax.broadcasted_iota(jnp.int32, (tl, B), 1)    # (tl, B)
    onehot = (idx == col).astype(jnp.float32)            # one-hot rows

    # Gather noise rows via MXU: (tl, B) @ (B, F) -> (tl, F).  Exact for
    # 0 / (1/(1-p)) valued noise.  Rows whose idx is outside [0, B) gather
    # zero; in the ragged last block those output rows are dropped anyway.
    gathered = jnp.dot(onehot, noise_ref[...],
                       preferred_element_type=jnp.float32)

    o_ref[...] = (x_ref[...].astype(jnp.float32) * gathered).astype(o_ref.dtype)


def _device_vmem_bytes():
    try:
        return int(pltpu.get_tpu_info().vmem_capacity_bytes)
    except Exception:
        return 64 << 20  # conservative fallback: v7x per-TensorCore VMEM


def _choose_tile_rows(L, F, B, itemsize, vmem_budget_bytes):
    # Per-row VMEM cost, including the full-tile f32 intermediates that the
    # kernel materializes (gathered noise, f32 upcast of x, one-hot).
    per_row = (4 * F * itemsize        # double-buffered x + out tiles
               + 2 * 128 * 4           # double-buffered (tl, 1) idx, lane-padded
               + 2 * F * 4             # f32 gathered + f32 upcast of x
               + B * 4)                # (tl, B) one-hot
    const = 2 * B * F * 4 + (2 << 20)  # resident noise block + headroom
    rows = max((vmem_budget_bytes - const) // max(per_row, 1), 8)
    # Byte-based cap: ~2 MiB x blocks sit on the HBM-roofline plateau and
    # amortize the ~0.35 us per-grid-step overhead.
    rows = min(rows, max((2 << 20) // max(F * itemsize, 1), 8), 8192)
    # Keep ~8 grid steps when there is enough work: >= 2 pipelined steps per
    # TensorCore on v7x (megacore), >= 3 steps on v5e/v6e for DMA overlap.
    rows = min(rows, max(-(-L // 8), 8))
    return max((int(rows) // 8) * 8, 8)


def feature_dropout(x, batch_idxs, noise, *, tile_rows=None,
                    vmem_budget_bytes=None):
    """Apply feature dropout given a precomputed (B, F) noise mask.

    x:          (L, F) float32 / bfloat16
    batch_idxs: (L,)   int32, values must lie in [0, B)
    noise:      (B, F) (values are 0 or 1/(1-p)); applied in float32
    """
    L, F = x.shape
    B, Fn = noise.shape
    assert Fn == F, "noise feature dim must match input feature dim"
    x_dtype = x.dtype
    itemsize = jnp.dtype(x_dtype).itemsize
    noise = noise.astype(jnp.float32)
    idx2d = batch_idxs.astype(jnp.int32).reshape(L, 1)

    physical_vmem = _device_vmem_bytes()
    if vmem_budget_bytes is None:
        # ~32 MiB on v7x (64 MiB physical), ~48 MiB on v5e/v6e (128 MiB).
        vmem_budget_bytes = min(48 << 20, physical_vmem // 2)

    if tile_rows is None:
        tile_rows = _choose_tile_rows(L, F, B, itemsize, vmem_budget_bytes)
    tile_rows = int(tile_rows)
    if tile_rows >= L:
        tile_rows = L                       # single full-array block
    else:
        tile_rows = max((tile_rows // 8) * 8, 8)

    grid = (pl.cdiv(L, tile_rows),)         # ragged last block handled by Pallas

    # VMEM accounting (double-buffered x/out/idx tiles, f32 intermediates,
    # one-hot, resident noise block, compiler scratch headroom).
    needed = (4 * tile_rows * F * itemsize
              + 2 * tile_rows * 128 * 4
              + 2 * tile_rows * F * 4
              + tile_rows * B * 4
              + 2 * B * F * 4
              + (4 << 20))
    vmem_limit = int(max(min(needed, physical_vmem - (8 << 20)), 16 << 20))

    cost = pl.CostEstimate(
        flops=2 * L * B * F + L * F,
        transcendentals=0,
        bytes_accessed=2 * L * F * itemsize + L * 4 + B * F * 4)

    out = pl.pallas_call(
        _feature_dropout_kernel,
        out_shape=jax.ShapeDtypeStruct((L, F), x_dtype),
        grid_spec=pltpu.PrefetchScalarGridSpec(
            num_scalar_prefetch=0,
            grid=grid,
            in_specs=[
                pl.BlockSpec((tile_rows, 1), lambda i: (i, 0)),    # batch idxs
                pl.BlockSpec((tile_rows, F), lambda i: (i, 0)),    # input rows
                pl.BlockSpec((B, F), lambda i: (0, 0)),            # full noise
            ],
            out_specs=pl.BlockSpec((tile_rows, F), lambda i: (i, 0)),
        ),
        compiler_params=pltpu.CompilerParams(
            dimension_semantics=("parallel",),
            vmem_limit_bytes=vmem_limit),
        cost_estimate=cost,
        input_output_aliases={1: 0},        # x -> out (in-place when donated)
    )(idx2d, x, noise)
    return out


def feature_dropout_module(x, batch_idxs, batch_size, *, p=0.5, train=True,
                           key=None):
    """Full FeatureDropout.forward semantics (train / eval, p edge cases)."""
    if p < 0 or p > 1:
        raise ValueError(
            "dropout probability has to be between 0 and 1, but got "
            "{}".format(p))
    if not train or p == 0:
        return x
    F = x.shape[1]
    if p == 1:
        noise = jnp.zeros((batch_size, F), dtype=jnp.float32)
    else:
        if key is None:
            raise ValueError("a PRNG key is required when train=True and 0<p<1")
        keep = jax.random.bernoulli(key, 1.0 - p, (batch_size, F))
        noise = keep.astype(jnp.float32) / (1.0 - p)
    return feature_dropout(x, batch_idxs, noise)


if __name__ == "__main__":
    key = jax.random.PRNGKey(0)
    k_x, k_noise, k_x2, k_noise2 = jax.random.split(key, 4)

    # Packed batch of 4 "sentences" with lengths 7, 5, 6, 4 -> L = 22 rows.
    lengths = [7, 5, 6, 4]
    B = len(lengths)
    L = sum(lengths)
    F = 128
    p = 0.5

    x = jax.random.normal(k_x, (L, F), dtype=jnp.float32)
    batch_idxs = jnp.concatenate(
        [jnp.full((n,), i, dtype=jnp.int32) for i, n in enumerate(lengths)])

    out = feature_dropout_module(x, batch_idxs, B, p=p, train=True, key=k_noise)
    out = jax.block_until_ready(out)

    # Reference check in plain JAX (same noise construction).
    keep = jax.random.bernoulli(k_noise, 1.0 - p, (B, F))
    noise_ref = keep.astype(jnp.float32) / (1.0 - p)
    ref = x * noise_ref[batch_idxs, :]
    assert jnp.allclose(out, ref, atol=1e-6), "mismatch vs reference (F=128)"

    # Non-lane-aligned feature dim exercises the masked-tail-store path.
    F2 = 48
    x2 = jax.random.normal(k_x2, (L, F2), dtype=jnp.float32)
    out2 = feature_dropout_module(x2, batch_idxs, B, p=p, train=True,
                                  key=k_noise2)
    out2 = jax.block_until_ready(out2)
    keep2 = jax.random.bernoulli(k_noise2, 1.0 - p, (B, F2))
    ref2 = x2 * (keep2.astype(jnp.float32) / (1.0 - p))[batch_idxs, :]
    assert jnp.allclose(out2, ref2, atol=1e-6), "mismatch vs reference (F=48)"

    # Eval mode is identity; p=1 zeroes everything.
    out_eval = feature_dropout_module(x, batch_idxs, B, p=p, train=False)
    assert jnp.allclose(out_eval, x)
    out_p1 = feature_dropout_module(x, batch_idxs, B, p=1.0, train=True)
    assert jnp.allclose(jax.block_until_ready(out_p1), jnp.zeros_like(x))

    print("KERNEL_OK")
</pallas_src>

<mosaic_0001>
module attributes {stable_mosaic.version = 11 : i64} {
  func.func @_feature_dropout_kernel(%arg0: i32, %arg1: memref<8x1xi32, #tpu.memory_space<vmem>>, %arg2: memref<8x128xf32, #tpu.memory_space<vmem>>, %arg3: memref<4x128xf32, #tpu.memory_space<vmem>>, %arg4: memref<8x128xf32, #tpu.memory_space<vmem>>) attributes {dimension_semantics = [#tpu.dimension_semantics<parallel>], iteration_bounds = array<i64: 3>, scalar_prefetch = 0 : i64, scratch_operands = 0 : i64, tpu.core_type = #tpu.core_type<tc>, window_params = [{transform_indices = @transform_0, window_bounds = array<i64: 8, 1>}, {transform_indices = @transform_1, window_bounds = array<i64: 8, 128>}, {pipeline_mode = #tpu.pipeline_mode<synchronous>, transform_indices = @transform_2, window_bounds = array<i64: 4, 128>}, {transform_indices = @transform_3, window_bounds = array<i64: 8, 128>}]} {
    %c0 = arith.constant 0 : index
    %c0_0 = arith.constant 0 : index
    %0 = vector.load %arg1[%c0, %c0_0] : memref<8x1xi32, #tpu.memory_space<vmem>>, vector<8x1xi32>
    %1 = tpu.iota {dimensions = array<i32: 1>} : vector<8x4xi32>
    %2 = vector.broadcast %0 : vector<8x1xi32> to vector<8x4xi32>
    %3 = arith.cmpi eq, %2, %1 : vector<8x4xi32>
    %4 = arith.extui %3 : vector<8x4xi1> to vector<8x4xi32>
    %5 = arith.sitofp %4 : vector<8x4xi32> to vector<8x4xf32>
    %c0_1 = arith.constant 0 : index
    %c0_2 = arith.constant 0 : index
    %6 = vector.load %arg3[%c0_1, %c0_2] : memref<4x128xf32, #tpu.memory_space<vmem>>, vector<4x128xf32>
    %cst = arith.constant dense<0.000000e+00> : vector<8x128xf32>
    %7 = tpu.matmul %5, %6, %cst {dimension_numbers = #tpu.dot_dimension_numbers<[1], [0], [0], [1], [0, 0, 1, 1], [], []>} : vector<8x4xf32>, vector<4x128xf32>, vector<8x128xf32> -> vector<8x128xf32>
    %c0_3 = arith.constant 0 : index
    %c0_4 = arith.constant 0 : index
    %8 = vector.load %arg2[%c0_3, %c0_4] : memref<8x128xf32, #tpu.memory_space<vmem>>, vector<8x128xf32>
    %9 = arith.mulf %8, %7 : vector<8x128xf32>
    %c0_5 = arith.constant 0 : index
    %c0_6 = arith.constant 0 : index
    %10 = vector.load %arg4[%c0_5, %c0_6] : memref<8x128xf32, #tpu.memory_space<vmem>>, vector<8x128xf32>
    tpu.vector_store %arg4[%c0_5, %c0_6], %9 {strides = array<i32>} : memref<8x128xf32, #tpu.memory_space<vmem>>, vector<8x128xf32>,
    return
  }
  func.func @transform_0(%arg0: i32) -> (i32, i32) {
    %c0_i32 = arith.constant 0 : i32
    %c0_i32_0 = arith.constant 0 : i32
    return %arg0, %c0_i32 : i32, i32
  }
  func.func @transform_1(%arg0: i32) -> (i32, i32) {
    %c0_i32 = arith.constant 0 : i32
    %c0_i32_0 = arith.constant 0 : i32
    return %arg0, %c0_i32 : i32, i32
  }
  func.func @transform_2(%arg0: i32) -> (i32, i32) {
    %c0_i32 = arith.constant 0 : i32
    %c0_i32_0 = arith.constant 0 : i32
    %c0_i32_1 = arith.constant 0 : i32
    return %c0_i32, %c0_i32_0 : i32, i32
  }
  func.func @transform_3(%arg0: i32) -> (i32, i32) {
    %c0_i32 = arith.constant 0 : i32
    %c0_i32_0 = arith.constant 0 : i32
    return %arg0, %c0_i32 : i32, i32
  }
}

</mosaic_0001>

<llo_original>
// kernel: tpu_custom_call.1
$region0: #{tpu_custom_call.1}
  #allocation0 [shape = 'u32[]', space=smem, size = 0x4, offset = 0x4, fixed_abs, tag = 'smem constant byte address 0x4 - core index']
  #allocation1 [shape = 'u32[144,128]{1,0:T(1,128)}', space=vmem, size = 0x12000, scoped, tag = 'internal scratch']
  %s0 = inlined_call_operand.vmem [shape: s32[22,1], index: 0, kind: input, shape index: {}]
  %s1 = inlined_call_operand.hbm [shape: f32[22,128], index: 1, kind: input, shape index: {}, may-alias: {1,3}]
  %s2 = inlined_call_operand.vmem [shape: f32[4,128], index: 2, kind: input, shape index: {}]
  %s3 = inlined_call_operand.hbm [shape: f32[22,128], index: 3, kind: output, shape index: {}, may-alias: {1,3}]
  %s4 = sld [smem:[#allocation0]]
  $region49: #{tpu_custom_call.1} parent=0
    _
  %s6 = ssub.s32 1, %s4
  %s7 = scalar_select 0, %s6, %s4
  $region1: #{tpu_custom_call.1} parent=0
    #allocation2 [shape = 'u8[8192]{0}', space=vmem, size = 0x2000, scoped, tag = 'input window, operand 1']
    #allocation3 [shape = 's32[2]{0}', space=sflag, size = 0x8, scoped, tag = 'scoped memory for tpu_custom_call.1']
    #allocation4 [shape = 's32[2]{0}', space=sflag, size = 0x8, scoped, tag = 'scoped memory for tpu_custom_call.1']
    #allocation5 [shape = 'u8[8192]{0}', space=vmem, size = 0x2000, scoped, tag = 'output window, operand 0']
    %8 = vsyncpa [#allocation3], 0
    %s9 = scalar_lea.sflag [#allocation3], 1
    %10 = vsyncpa %s9, 0
    %11 = vsyncpa [#allocation4], 0
    %s12 = scalar_lea.sflag [#allocation4], 1
    %13 = vsyncpa %s12, 0
    loop: start=0, step=1, limit=5
    $region2: #{tpu_custom_call.1} parent=1 // loop_pre_header
      _
    $region3: #{tpu_custom_call.1} parent=1 // loop_header
      %s15 = sphi 0, %s19
      %p16 = scmp.ge.s32.totalorder %s15, 5
      %s25 = sphi 0, %s27
      %s28 = sphi 0, %s25
      %s29 = sphi 0, %s28
      %s45 = sphi 0, %s29
      %s51 = sphi 0, %s53
      %s54 = sphi 0, %s51
      %s55 = sphi 0, %s54
      %s71 = sphi 0, %s55
      %s75 = sphi 0, %s75
      %s77 = sphi 0, %s75
      %s78 = sphi 0, %s77
      %s92 = sphi 0, %s78
      %s98 = sphi 0, %s100
      %s101 = sphi 0, %s98
      %s102 = sphi 0, %s101
      %s118 = sphi 0, %s102
    $region4: #{tpu_custom_call.1} parent=1 // loop_header_branch
      %18 = sbr.rel (%p16) target = $region8
    $region5: #{tpu_custom_call.1} parent=1 // loop_body
      %s20 = ssub.s32 %s15, 1
      %s21 = ssub.s32 %s15, 2
      %s22 = sadd.s32 %s15, 1
      %s23 = ssub.s32 %s15, %s22
      %p24 = scmp.eq.s32.totalorder %s23, 0
      %s26 = sadd.s32 %s25, 1
      %s27 = scalar_select %p24, %s25, %s26
      %p30 = pneg %p24
      %p31 = scmp.eq.s32.totalorder %s15, 2
      %p32 = por %p30, %p31
      %p33 = scmp.ne.s32.totalorder %s25, %s28
      %p34 = scmp.eq.s32.totalorder %s15, 0
      %p35 = por %p33, %p34
      %p36 = scmp.ne.s32.totalorder %s25, %s28
      %p37 = scmp.eq.s32.totalorder %s20, 2
      %p38 = por %p36, %p37
      %p39 = scmp.ne.s32.totalorder %s28, %s29
      %p40 = scmp.eq.s32.totalorder %s20, 0
      %p41 = por %p39, %p40
      %p42 = scmp.ne.s32.totalorder %s28, %s29
      %p43 = scmp.eq.s32.totalorder %s21, 2
      %p44 = por %p42, %p43
      %p46 = scmp.ne.s32.totalorder %s29, %s45
      %p47 = scmp.eq.s32.totalorder %s21, 0
      %p48 = por %p46, %p47
      %s49 = ssub.s32 %s15, %s22
      %p50 = scmp.eq.s32.totalorder %s49, 0
      %s52 = sadd.s32 %s51, 1
      %s53 = scalar_select %p50, %s51, %s52
      %p56 = pneg %p50
      %p57 = scmp.eq.s32.totalorder %s15, 2
      %p58 = por %p56, %p57
      %p59 = scmp.ne.s32.totalorder %s51, %s54
      %p60 = scmp.eq.s32.totalorder %s15, 0
      %p61 = por %p59, %p60
      %p62 = scmp.ne.s32.totalorder %s51, %s54
      %p63 = scmp.eq.s32.totalorder %s20, 2
      %p64 = por %p62, %p63
      %p65 = scmp.ne.s32.totalorder %s54, %s55
      %p66 = scmp.eq.s32.totalorder %s20, 0
      %p67 = por %p65, %p66
      %p68 = scmp.ne.s32.totalorder %s54, %s55
      %p69 = scmp.eq.s32.totalorder %s21, 2
      %p70 = por %p68, %p69
      %p72 = scmp.ne.s32.totalorder %s55, %s71
      %p73 = scmp.eq.s32.totalorder %s21, 0
      %p74 = por %p72, %p73
      %s76 = sadd.s32 %s75, 1
      %p79 = scmp.eq.s32.totalorder %s15, 2
      %p80 = scmp.ne.s32.totalorder %s75, %s77
      %p81 = scmp.eq.s32.totalorder %s15, 0
      %p82 = por %p80, %p81
      %p83 = scmp.ne.s32.totalorder %s75, %s77
      %p84 = scmp.eq.s32.totalorder %s20, 2
      %p85 = por %p83, %p84
      %p86 = scmp.ne.s32.totalorder %s77, %s78
      %p87 = scmp.eq.s32.totalorder %s20, 0
      %p88 = por %p86, %p87
      %p89 = scmp.ne.s32.totalorder %s77, %s78
      %p90 = scmp.eq.s32.totalorder %s21, 2
      %p91 = por %p89, %p90
      %p93 = scmp.ne.s32.totalorder %s78, %s92
      %p94 = scmp.eq.s32.totalorder %s21, 0
      %p95 = por %p93, %p94
      %s96 = ssub.s32 %s15, %s22
      %p97 = scmp.eq.s32.totalorder %s96, 0
      %s99 = sadd.s32 %s98, 1
      %s100 = scalar_select %p97, %s98, %s99
      %p103 = pneg %p97
      %p104 = scmp.eq.s32.totalorder %s15, 2
      %p105 = por %p103, %p104
      %p106 = scmp.ne.s32.totalorder %s98, %s101
      %p107 = scmp.eq.s32.totalorder %s15, 0
      %p108 = por %p106, %p107
      %p109 = scmp.ne.s32.totalorder %s98, %s101
      %p110 = scmp.eq.s32.totalorder %s20, 2
      %p111 = por %p109, %p110
      %p112 = scmp.ne.s32.totalorder %s101, %s102
      %p113 = scmp.eq.s32.totalorder %s20, 0
      %p114 = por %p112, %p113
      %p115 = scmp.ne.s32.totalorder %s101, %s102
      %p116 = scmp.eq.s32.totalorder %s21, 2
      %p117 = por %p115, %p116
      %p119 = scmp.ne.s32.totalorder %s102, %s118
      %p120 = scmp.eq.s32.totalorder %s21, 0
      %p121 = por %p119, %p120
      %p122 = scmp.le.s32.totalorder 1, %s15
      %p123 = scmp.lt.s32.totalorder %s15, 4
      %p124 = pnand %p122, %p123
      %p125 = pneg %p124
      // Predicated region
      $region9: #{tpu_custom_call.1} parent=5 // pred_check
        _
      $region10: #{tpu_custom_call.1} parent=5 // pred_check_branch
        %127 = sbr.rel (%p124) target = $region12
      $region11: #{tpu_custom_call.1} parent=5 // pred_region
        %s128 = ssub.s32 %s15, 1
        // Predicated region
        $region13: #{tpu_custom_call.1} parent=11 // pred_check
          %p129 = pneg %p88
        $region14: #{tpu_custom_call.1} parent=11 // pred_check_branch
          %131 = sbr.rel (%p129) target = $region16
        $region15: #{tpu_custom_call.1} parent=11 // pred_region
          _
        $region16: #{tpu_custom_call.1} parent=11 // pred_fallthru
          _
      $region12: #{tpu_custom_call.1} parent=5 // pred_fallthru
        _
      %p132 = scmp.lt.s32.totalorder %s15, 3
      // Predicated region
      $region17: #{tpu_custom_call.1} parent=5 // pred_check
        %p133 = pneg %p132
      $region18: #{tpu_custom_call.1} parent=5 // pred_check_branch
        %135 = sbr.rel (%p133) target = $region20
      $region19: #{tpu_custom_call.1} parent=5 // pred_region
        // Predicated region
        $region21: #{tpu_custom_call.1} parent=19 // pred_check
          %p136 = pneg %p35
        $region22: #{tpu_custom_call.1} parent=19 // pred_check_branch
          %138 = sbr.rel (%p136) target = $region24
        $region23: #{tpu_custom_call.1} parent=19 // pred_region
          %p139 = scmp.lt.s32.totalorder %s15, 2
          %s140 = scalar_select %p139, %s15, 2
          %s141 = smul.addr %s140, 8
          %s142 = scalar_lea.vmem %s0, %s141
        $region24: #{tpu_custom_call.1} parent=19 // pred_fallthru
          _
        // Predicated region
        $region25: #{tpu_custom_call.1} parent=19 // pred_check
          %p143 = pneg %p61
        $region26: #{tpu_custom_call.1} parent=19 // pred_check_branch
          %145 = sbr.rel (%p143) target = $region28
        $region27: #{tpu_custom_call.1} parent=19 // pred_region
          %s146 = sand.u32 %s51, 1
          %s147 = scalar_lea.sflag [#allocation3], %s146
          %s148 = sand.u32 %s51, 1
          %s149 = smul.addr %s148, 8
          %s150 = scalar_lea.vmem [#allocation2], %s149
          %s152 = ssub.s32 128, 128
          %153 = vsyncadd %s147, %s152
          %s154 = smul.addr %s15, 128
          %s155 = scalar_lea.hbm %s1, %s154
          %s157 = sshll.u32 %s150, 4
          %s158 = int_to_ptr.vmem [resolvable:$true] %s157
          %160 = dma.hbm_to_vmem [thread:$0]  %s155, 128, %s158, %s147
        $region28: #{tpu_custom_call.1} parent=19 // pred_fallthru
          _
      $region20: #{tpu_custom_call.1} parent=5 // pred_fallthru
        _
      %p161 = scmp.le.s32.totalorder 1, %s15
      %p162 = scmp.lt.s32.totalorder %s15, 4
      %p163 = pnand %p161, %p162
      %p164 = pneg %p163
      // Predicated region
      $region29: #{tpu_custom_call.1} parent=5 // pred_check
        _
      $region30: #{tpu_custom_call.1} parent=5 // pred_check_branch
        %166 = sbr.rel (%p163) target = $region32
      $region31: #{tpu_custom_call.1} parent=5 // pred_region
        %s167 = ssub.s32 %s15, 1
        %s168 = sand.u32 %s54, 1
        %s169 = scalar_lea.sflag [#allocation3], %s168
        %s170 = sand.u32 %s54, 1
        %s171 = smul.addr %s170, 8
        %s172 = scalar_lea.vmem [#allocation2], %s171
        // Predicated region
        $region33: #{tpu_custom_call.1} parent=31 // pred_check
          %p173 = pneg %p67
        $region34: #{tpu_custom_call.1} parent=31 // pred_check_branch
          %175 = sbr.rel (%p173) target = $region36
        $region35: #{tpu_custom_call.1} parent=31 // pred_region
          %176 = dma.done %s169, 128
        $region36: #{tpu_custom_call.1} parent=31 // pred_fallthru
          _
        %p177 = scmp.lt.s32.totalorder %s20, 2
        %s178 = scalar_select %p177, %s20, 2
        %s179 = smul.addr %s178, 8
        %s180 = scalar_lea.vmem %s0, %s179
        %p181 = pneg %p41
        %p182 = pneg %p38
        %s183 = sand.u32 %s54, 1
        %s184 = scalar_lea.sflag [#allocation3], %s183
        %s185 = sand.u32 %s54, 1
        %s186 = smul.addr %s185, 8
        %s187 = scalar_lea.vmem [#allocation2], %s186
        %p188 = pneg %p67
        %p189 = pneg %p64
        %p190 = pneg %p88
        %p191 = pneg %p85
        %p192 = pneg %p114
        %p193 = pneg %p111
        %s194 = sand.u32 %s101, 1
        %s195 = scalar_lea.sflag [#allocation4], %s194
        %s196 = sand.u32 %s101, 1
        %s197 = smul.addr %s196, 8
        %s198 = scalar_lea.vmem [#allocation5], %s197
        %p199 = scmp.lt.s32.totalorder %s20, 2
        %s200 = scalar_select %p199, %s20, 2
        %s201 = smul.addr %s200, 8
        %s202 = scalar_lea.vmem %s0, %s201
        %v203 = vld [vmem:[%s202] sm:$0xff]
        %v204 = vlaneseq
        %v205 = vand.u32 %v204, 127
        %206 = vset.pattern.permute.xlu0 0
        %207 = vperm.xlu0 %206, %v203
        %v208 = vpop.permute.xlu0 %207
        %vm209 = vcmp.eq.s32.totalorder %v208, %v205
        %v210 = vsel %vm209, 1, 0
        %v211 = vcvt.s32.f32 %v210
        %v212 = vld [vmem:[%s2] sm:$0xf]
        %vm213 = vcmask 31744
        %v215 = vsel %vm213, %v211, 0
        %vm217 = vcmask 1043456
        %v219 = vsel %vm217, %v212, 0
        %221 = vmatprep.subr.mxu0 0.0
        %222 = vmatpush1.msra.mxu0 %v219
        %223 = vmatprep.subr.mxu0 0.0
        %224 = vmatpush1.msra.mxu0 0.0
        %225 = vmatprep.subr.mxu0 0.0
        %226 = vmatpush1.msra.mxu0 0.0
        %227 = vmatprep.subr.mxu0 0.0
        %228 = vmatpush1.msra.mxu0 0.0
        %229 = vmatprep.subr.mxu0 0.0
        %230 = vmatpush1.msra.mxu0 0.0
        %231 = vmatprep.subr.mxu0 0.0
        %232 = vmatpush1.msra.mxu0 0.0
        %233 = vmatprep.subr.mxu0 0.0
        %234 = vmatpush1.msra.mxu0 0.0
        %235 = vmatprep.subr.mxu0 0.0
        %236 = vmatpush1.msra.mxu0 0.0
        %237 = vmatprep.subr.mxu0 0.0
        %238 = vmatpush1.msra.mxu0 0.0
        %239 = vmatprep.subr.mxu0 0.0
        %240 = vmatpush1.msra.mxu0 0.0
        %241 = vmatprep.subr.mxu0 0.0
        %242 = vmatpush1.msra.mxu0 0.0
        %243 = vmatprep.subr.mxu0 0.0
        %244 = vmatpush1.msra.mxu0 0.0
        %245 = vmatprep.subr.mxu0 0.0
        %246 = vmatpush1.msra.mxu0 0.0
        %247 = vmatprep.subr.mxu0 0.0
        %248 = vmatpush1.msra.mxu0 0.0
        %249 = vmatprep.subr.mxu0 0.0
        %250 = vmatpush1.msra.mxu0 0.0
        %251 = vmatprep.subr.mxu0 0.0
        %252 = vmatpush1.msra.mxu0 0.0
        %253 = vmatprep.subr.mxu0 0.0
        %254 = vmatpush1.msra.mxu0 0.0
        %255 = vmatprep.subr.mxu0 0.0
        %256 = vmatpush1.msra.mxu0 0.0
        %257 = vmatprep.subr.mxu0 0.0
        %258 = vmatpush1.msra.mxu0 0.0
        %259 = vmatprep.subr.mxu0 0.0
        %260 = vmatpush1.msra.mxu0 0.0
        %261 = vmatprep.subr.mxu0 0.0
        %262 = vmatpush1.msra.mxu0 0.0
        %263 = vmatprep.subr.mxu0 0.0
        %264 = vmatpush1.msra.mxu0 0.0
        %265 = vmatprep.subr.mxu0 0.0
        %266 = vmatpush1.msra.mxu0 0.0
        %267 = vmatprep.subr.mxu0 0.0
        %268 = vmatpush1.msra.mxu0 0.0
        %269 = vmatprep.subr.mxu0 0.0
        %270 = vmatpush1.msra.mxu0 0.0
        %271 = vmatprep.subr.mxu0 0.0
        %272 = vmatpush1.msra.mxu0 0.0
        %273 = vmatprep.subr.mxu0 0.0
        %274 = vmatpush1.msra.mxu0 0.0
        %275 = vmatprep.subr.mxu0 0.0
        %276 = vmatpush1.msra.mxu0 0.0
        %277 = vmatprep.subr.mxu0 0.0
        %278 = vmatpush1.msra.mxu0 0.0
        %279 = vmatprep.subr.mxu0 0.0
        %280 = vmatpush1.msra.mxu0 0.0
        %281 = vmatprep.subr.mxu0 0.0
        %282 = vmatpush1.msra.mxu0 0.0
        %283 = vmatprep.subr.mxu0 0.0
        %284 = vmatpush1.msra.mxu0 0.0
        %285 = vmatprep.mubr.f32.mxu0 0.0
        %286 = vmatmul.mubr.f32.gmra.mrb[0].mxu0 %v215
        %v287 = vpop.f32.mrb[0].mxu0
        %v288 = vadd.f32 0.0, %v287
        %v289 = vpop.f32.mrb[0].mxu0
        %290 = vdwg.mxu0
        %v291 = vld [vmem:[%s172] sm:$0xff]
        %v292 = vmul.f32 %v291, %v288
        %293 = vst [vmem:[%s198] sm:$0xff] %v292
        %s294 = sand.u32 %s101, 1
        %s295 = scalar_lea.sflag [#allocation4], %s294
        %s296 = sand.u32 %s101, 1
        %s297 = smul.addr %s296, 8
        %s298 = scalar_lea.vmem [#allocation5], %s297
        // Predicated region
        $region37: #{tpu_custom_call.1} parent=31 // pred_check
          %p299 = pneg %p111
        $region38: #{tpu_custom_call.1} parent=31 // pred_check_branch
          %301 = sbr.rel (%p299) target = $region40
        $region39: #{tpu_custom_call.1} parent=31 // pred_region
          %s303 = ssub.s32 128, 128
          %304 = vsyncadd %s295, %s303
          %s305 = smul.addr %s20, 128
          %s306 = scalar_lea.hbm %s3, %s305
          %s308 = sshll.u32 %s298, 4
          %s309 = int_to_ptr.vmem [resolvable:$true] %s308
          %311 = dma.vmem_to_hbm [thread:$0]  %s309, 128, %s306, %s295
        $region40: #{tpu_custom_call.1} parent=31 // pred_fallthru
          _
      $region32: #{tpu_custom_call.1} parent=5 // pred_fallthru
        _
      %p312 = scmp.le.s32.totalorder 2, %s15
      // Predicated region
      $region41: #{tpu_custom_call.1} parent=5 // pred_check
        %p313 = pneg %p312
      $region42: #{tpu_custom_call.1} parent=5 // pred_check_branch
        %315 = sbr.rel (%p313) target = $region44
      $region43: #{tpu_custom_call.1} parent=5 // pred_region
        %s316 = ssub.s32 %s15, 2
        // Predicated region
        $region45: #{tpu_custom_call.1} parent=43 // pred_check
          %p317 = pneg %p117
        $region46: #{tpu_custom_call.1} parent=43 // pred_check_branch
          %319 = sbr.rel (%p317) target = $region48
        $region47: #{tpu_custom_call.1} parent=43 // pred_region
          %s320 = sand.u32 %s102, 1
          %s321 = scalar_lea.sflag [#allocation4], %s320
          %s322 = sand.u32 %s102, 1
          %s323 = smul.addr %s322, 8
          %s324 = scalar_lea.vmem [#allocation5], %s323
          %325 = dma.done %s321, 128
        $region48: #{tpu_custom_call.1} parent=43 // pred_fallthru
          _
      $region44: #{tpu_custom_call.1} parent=5 // pred_fallthru
        _
    $region6: #{tpu_custom_call.1} parent=1 // loop_footer
      %s19 = sadd.s32 1, %s15
    $region7: #{tpu_custom_call.1} parent=1 // loop_footer_branch
      %14 = sbr.rel target = $region3
    $region8: #{tpu_custom_call.1} parent=1 // loop_exit
      _
    %326 = vsyncpa [#allocation3], 1
    %s327 = scalar_lea.sflag [#allocation3], 1
    %328 = vsyncpa %s327, 1
    %329 = vsyncpa [#allocation4], 1
    %s330 = scalar_lea.sflag [#allocation4], 1
    %331 = vsyncpa %s330, 1

</llo_original>
